<compile_context>
chip_gen: v7x
topology: tpu7x:2x2x1
jax: 0.10.0
libtpu: 0.0.40
codegen_flags: <defaults>
</compile_context>

<pallas_src>
import jax
import jax.numpy as jnp
from jax import lax
from jax.experimental import pallas as pl
from jax.experimental.pallas import tpu as pltpu


def _round_up(x, m):
    return ((x + m - 1) // m) * m


# --------------------------------------------------------------------------
# Kernel 1 (parallel over nodes & time): fused GCN encode + GRU input proj.
#   ax   = A_rows @ X_lanes            one lane-fused (N, Tb*F) MXU matmul
#   z    = ReLU(ax_flat @ W_gcn)       batched over Tb*Nb rows
#   g    = z @ [W_ir|W_iz|W_in]_pad + [b_ir+b_hr | b_iz+b_hz | b_in]_pad
# --------------------------------------------------------------------------
def _encode_project_kernel(a_ref, x_ref, wg_ref, wi_ref, bi_ref, g_ref, axf_sc):
    nb = a_ref.shape[0]          # node-row block
    f = axf_sc.shape[1]          # raw feature width
    tb = x_ref.shape[1] // f     # timesteps in this block
    gp = g_ref.shape[2]

    # ONE lane-dense MXU matmul for the dominant N^2 contraction.
    ax = jnp.dot(a_ref[...], x_ref[...],
                 preferred_element_type=jnp.float32)          # (nb, tb*f)

    # Unfuse time from lanes into rows (cheap slice copies, overlap with MXU).
    for t in range(tb):                                       # static unroll
        axf_sc[pl.ds(t * nb, nb), :] = ax[:, t * f:(t + 1) * f].astype(axf_sc.dtype)

    axf = axf_sc[...]                                         # (tb*nb, f)
    z = jnp.maximum(
        jnp.dot(axf, wg_ref[...], preferred_element_type=jnp.float32), 0.0)
    g = jnp.dot(z.astype(wi_ref.dtype), wi_ref[...],
                preferred_element_type=jnp.float32) + bi_ref[...]
    g_ref[...] = g.reshape(tb, nb, gp).astype(g_ref.dtype)    # lane-dense bf16 store


def encode_and_project(a_norm, x_lanes, w_gcn_p, w_i_p, b_i_p, *, tb, nb, f):
    """a_norm: (N,N), x_lanes: (N, T*F) time-fused lanes, w_gcn_p: (F,Hgp),
    w_i_p: (Hgp,GP), b_i_p: (1,GP)  ->  gates: (T,N,GP) bf16 (GP = 3*Hp)."""
    n = a_norm.shape[0]
    t_steps = x_lanes.shape[1] // f
    hgp = w_gcn_p.shape[1]
    gp = w_i_p.shape[1]
    return pl.pallas_call(
        _encode_project_kernel,
        out_shape=jax.ShapeDtypeStruct((t_steps, n, gp), jnp.bfloat16),
        grid_spec=pltpu.PrefetchScalarGridSpec(
            num_scalar_prefetch=0,
            grid=(n // nb, t_steps // tb),
            in_specs=[
                pl.BlockSpec((nb, n), lambda b, i: (b, 0)),        # A row block
                pl.BlockSpec((n, tb * f), lambda b, i: (0, i)),    # X time-fused lanes
                pl.BlockSpec((f, hgp), lambda b, i: (0, 0)),       # W_gcn (padded)
                pl.BlockSpec((hgp, gp), lambda b, i: (0, 0)),      # [W_ir|W_iz|W_in]
                pl.BlockSpec((1, gp), lambda b, i: (0, 0)),        # fused input biases
            ],
            out_specs=pl.BlockSpec((tb, nb, gp), lambda b, i: (i, b, 0)),
            scratch_shapes=[pltpu.VMEM((tb * nb, f), jnp.bfloat16)],
        ),
        compiler_params=pltpu.CompilerParams(
            dimension_semantics=("parallel", "parallel"),   # megacore-shardable
            vmem_limit_bytes=48 * 1024 * 1024),
    )(a_norm, x_lanes, w_gcn_p, w_i_p, b_i_p)


# --------------------------------------------------------------------------
# Kernel 2 (sequential over time, parallel over node blocks): GRU with
# precomputed input gates.  Time-blocked: each grid step runs Tbs steps in an
# unrolled fori_loop carrying h locally; the cross-block carry lives in the
# resident hT output block (constant time index).  All widths 128-padded.
# --------------------------------------------------------------------------
def _gru_kernel(g_ref, h0_ref, wh_ref, bhn_ref, zs_ref, ht_ref):
    hp = ht_ref.shape[-1]
    tbs = g_ref.shape[0]

    @pl.when(pl.program_id(1) == 0)
    def _():
        ht_ref[...] = h0_ref[...]

    wh = wh_ref[...]                     # (Hp, 3Hp) f32 (tiny matmul, keep f32)
    bhn = bhn_ref[...]                   # (1, Hp)

    def step(t, h):
        g = g_ref[t].astype(jnp.float32)                      # (Nb, 3Hp)
        hh = jnp.dot(h, wh, preferred_element_type=jnp.float32)
        # 128-aligned whole-vreg gate slices (Hp multiple of 128).
        r = jax.nn.sigmoid(g[:, 0:hp] + hh[:, 0:hp])
        u = jax.nn.sigmoid(g[:, hp:2 * hp] + hh[:, hp:2 * hp])
        c = jnp.tanh(g[:, 2 * hp:3 * hp] + r * (hh[:, 2 * hp:3 * hp] + bhn))
        h_new = (1.0 - u) * c + u * h                         # nn.GRU cell update
        zs_ref[t] = h_new.astype(zs_ref.dtype)                # lane-dense store
        return h_new

    h_final = lax.fori_loop(0, tbs, step, ht_ref[...], unroll=True)
    ht_ref[...] = h_final                                     # carry + final hidden


def gru_forward(g_seq, h0_p, w_h_p, b_hn_p, *, tbs, nb):
    """g_seq: (T,N,3Hp) bf16, h0_p: (N,Hp) f32, w_h_p: (Hp,3Hp) f32,
    b_hn_p: (1,Hp) f32  ->  (zs: (T,N,Hp) f32, hT: (N,Hp) f32)."""
    t_steps, n, gp = g_seq.shape
    hp = w_h_p.shape[0]
    zs, h_t = pl.pallas_call(
        _gru_kernel,
        out_shape=(jax.ShapeDtypeStruct((t_steps, n, hp), jnp.float32),
                   jax.ShapeDtypeStruct((n, hp), jnp.float32)),
        grid_spec=pltpu.PrefetchScalarGridSpec(
            num_scalar_prefetch=0,
            grid=(n // nb, t_steps // tbs),        # node blocks outer, time inner
            in_specs=[
                pl.BlockSpec((tbs, nb, gp), lambda b, t: (t, b, 0)),  # gates block
                pl.BlockSpec((nb, hp), lambda b, t: (b, 0)),          # h0
                pl.BlockSpec((hp, gp), lambda b, t: (0, 0)),          # [W_hr|W_hz|W_hn]
                pl.BlockSpec((1, hp), lambda b, t: (0, 0)),           # b_hn
            ],
            out_specs=[
                pl.BlockSpec((tbs, nb, hp), lambda b, t: (t, b, 0)),  # zs block
                pl.BlockSpec((nb, hp), lambda b, t: (b, 0)),          # hT (resident carry)
            ],
        ),
        compiler_params=pltpu.CompilerParams(
            dimension_semantics=("parallel", "arbitrary"),  # carry axis stays serial
            vmem_limit_bytes=48 * 1024 * 1024),
    )(g_seq, h0_p, w_h_p, b_hn_p)
    return zs, h_t


# --------------------------------------------------------------------------
# Parameter packing (once, in the wrapper).  Every gate is padded to
# Hp = round_up(H,128) lanes with zero weights/biases -> padded lanes of g,
# hh and h stay exactly 0 throughout the recurrence.
# --------------------------------------------------------------------------
def pack_params(w_gcn, p, compute_dtype=jnp.bfloat16):
    f, hg = w_gcn.shape
    h = p["whr"].shape[0]
    hgp = _round_up(hg, 128)
    hp = _round_up(h, 128)
    gp = 3 * hp

    wg_p = jnp.zeros((f, hgp), jnp.float32).at[:, :hg].set(w_gcn)

    w_i_p = jnp.zeros((hgp, gp), jnp.float32)
    b_i_p = jnp.zeros((1, gp), jnp.float32)
    w_h_p = jnp.zeros((hp, gp), jnp.float32)
    gates = [(p["wir"], p["whr"], p["bir"] + p["bhr"]),
             (p["wiz"], p["whz"], p["biz"] + p["bhz"]),
             (p["win"], p["whn"], p["bin"])]
    for k, (wi, wh, bi) in enumerate(gates):
        w_i_p = w_i_p.at[:hg, k * hp:k * hp + h].set(wi)
        b_i_p = b_i_p.at[:, k * hp:k * hp + h].set(bi)
        w_h_p = w_h_p.at[:h, k * hp:k * hp + h].set(wh)
    b_hn_p = jnp.zeros((1, hp), jnp.float32).at[:, :h].set(p["bhn"])

    return (wg_p.astype(compute_dtype), w_i_p.astype(compute_dtype),
            b_i_p.astype(jnp.float32), w_h_p.astype(jnp.float32),
            b_hn_p.astype(jnp.float32), hp, hgp)


def _pick_encode_time_block(t_steps, f, max_tb=64):
    # Prefer a block whose fused lane width Tb*F is a multiple of 128;
    # otherwise use the full sequence (block == full dim is always legal).
    # TODO(synk): for very large T with no 128-aligned divisor, pad F instead.
    for tb in range(min(max_tb, t_steps), 0, -1):
        if t_steps % tb == 0 and (tb * f) % 128 == 0:
            return tb
    return t_steps


def _pick_gru_time_block(t_steps, max_tbs=16):
    for tbs in range(min(max_tbs, t_steps), 0, -1):
        if t_steps % tbs == 0:
            return tbs
    return 1


def _pick_node_block(n, max_nb=256):
    if n <= max_nb:
        return n
    for nb in range(max_nb, 7, -1):
        if n % nb == 0 and nb % 8 == 0:
            return nb
    return n


# --------------------------------------------------------------------------
# DTGAE_Recurrent.forward equivalent
# --------------------------------------------------------------------------
def dtgae_recurrent_forward(worker_x, a_norm, w_gcn, gru_params,
                            include_h=False, h0=None,
                            compute_dtype=jnp.bfloat16):
    """worker_x: list of (T_i, N, F) per-worker feature sequences."""
    n = a_norm.shape[0]
    f = worker_x[0].shape[-1]
    h = gru_params["whr"].shape[0]

    len_from_each = [int(x.shape[0]) for x in worker_x]        # self.len_from_each
    # Worker fusion: the `for f in futs:` loop with h0 carry is equivalent to
    # one GRU over the time-concatenated sequence; torch.cat(zs) is a no-op.
    x_all = jnp.concatenate(worker_x, axis=0)
    t_steps = x_all.shape[0]

    wg_p, w_i_p, b_i_p, w_h_p, b_hn_p, hp, _ = pack_params(
        w_gcn, gru_params, compute_dtype)

    h0_p = jnp.zeros((n, hp), jnp.float32)
    if h0 is not None:
        h0_p = h0_p.at[:, :h].set(h0.astype(jnp.float32))

    # Time fused into lanes for the A@X contraction: (T,N,F) -> (N, T*F).
    x_lanes = jnp.transpose(x_all, (1, 0, 2)).reshape(n, t_steps * f)
    x_lanes = x_lanes.astype(compute_dtype)

    nb = _pick_node_block(n)
    tb_enc = _pick_encode_time_block(t_steps, f)
    g_seq = encode_and_project(a_norm.astype(compute_dtype), x_lanes, wg_p,
                               w_i_p, b_i_p, tb=tb_enc, nb=nb, f=f)

    tbs = _pick_gru_time_block(t_steps)
    zs_p, h_t_p = gru_forward(g_seq, h0_p, w_h_p, b_hn_p, tbs=tbs, nb=nb)

    zs = zs_p[..., :h]          # drop the 128-lane padding in the wrapper
    h_t = h_t_p[:, :h]
    if include_h:
        return zs, h_t, len_from_each
    return zs, len_from_each


# --------------------------------------------------------------------------
# Pure-JAX f32 reference (matches the PyTorch module math)
# --------------------------------------------------------------------------
def _reference_forward(worker_x, a_norm, w_gcn, p, h0):
    h = h0
    zs = []
    for x_i in worker_x:
        for t in range(x_i.shape[0]):
            z = jax.nn.relu(a_norm @ x_i[t] @ w_gcn)
            r = jax.nn.sigmoid(z @ p["wir"] + p["bir"] + h @ p["whr"] + p["bhr"])
            u = jax.nn.sigmoid(z @ p["wiz"] + p["biz"] + h @ p["whz"] + p["bhz"])
            c = jnp.tanh(z @ p["win"] + p["bin"] + r * (h @ p["whn"] + p["bhn"]))
            h = (1.0 - u) * c + u * h
            zs.append(h)
    return jnp.stack(zs, axis=0), h


# --------------------------------------------------------------------------
# Deterministic setup + run
# --------------------------------------------------------------------------
def _ring_adjacency(n):
    """Symmetric-normalized ring graph with self loops, deterministic."""
    idx = jnp.arange(n)
    a = jnp.zeros((n, n), jnp.float32)
    a = a.at[idx, (idx + 1) % n].set(1.0)
    a = a.at[(idx + 1) % n, idx].set(1.0)
    a = a + jnp.eye(n, dtype=jnp.float32)
    deg = a.sum(axis=1)
    d_inv_sqrt = 1.0 / jnp.sqrt(deg)
    return a * d_inv_sqrt[:, None] * d_inv_sqrt[None, :]


if __name__ == "__main__":
    key = jax.random.PRNGKey(0)
    num_workers = 2
    t_per_worker = 4          # each "remote" worker holds 4 graph snapshots
    n_nodes = 16
    f_in = 8
    h_gcn = 32
    h_rnn = 32

    keys = jax.random.split(key, 16)
    a_norm = _ring_adjacency(n_nodes)

    # per-worker snapshot node features (the data that "lives on the workers")
    worker_x = [
        jax.random.normal(keys[i], (t_per_worker, n_nodes, f_in), jnp.float32)
        for i in range(num_workers)
    ]

    # GCN encoder weight (shared; DDP keeps worker replicas identical)
    w_gcn = 0.1 * jax.random.normal(keys[4], (f_in, h_gcn), jnp.float32)

    # GRU (RNN) parameters, stored pre-transposed for x @ W
    def w(k, shape):
        return 0.1 * jax.random.normal(k, shape, jnp.float32)

    gru_params = {
        "wir": w(keys[5], (h_gcn, h_rnn)),
        "wiz": w(keys[6], (h_gcn, h_rnn)),
        "win": w(keys[7], (h_gcn, h_rnn)),
        "whr": w(keys[8], (h_rnn, h_rnn)),
        "whz": w(keys[9], (h_rnn, h_rnn)),
        "whn": w(keys[10], (h_rnn, h_rnn)),
        "bir": w(keys[11], (1, h_rnn)),
        "biz": w(keys[12], (1, h_rnn)),
        "bin": w(keys[13], (1, h_rnn)),
        "bhr": w(keys[14], (1, h_rnn)),
        "bhz": w(keys[15], (1, h_rnn)),
        "bhn": jnp.zeros((1, h_rnn), jnp.float32),
    }

    # TODO(synk): RPC/DDP worker dispatch, state-dict save/load, and the
    # loss/scoring NotImplementedError stubs have no kernel equivalent.
    zs, h_final, len_from_each = dtgae_recurrent_forward(
        worker_x, a_norm, w_gcn, gru_params, include_h=True)

    jax.block_until_ready(zs)
    jax.block_until_ready(h_final)

    assert zs.shape == (num_workers * t_per_worker, n_nodes, h_rnn), zs.shape
    assert h_final.shape == (n_nodes, h_rnn), h_final.shape
    assert len_from_each == [t_per_worker] * num_workers
    assert bool(jnp.all(jnp.isfinite(zs)))

    # numeric check vs. pure-JAX f32 reference (bf16 compute -> loose atol)
    h0_ref = jnp.zeros((n_nodes, h_rnn), jnp.float32)
    zs_ref, h_ref = _reference_forward(worker_x, a_norm, w_gcn, gru_params, h0_ref)
    max_err = float(jnp.max(jnp.abs(zs - zs_ref)))
    max_err_h = float(jnp.max(jnp.abs(h_final - h_ref)))
    assert max_err < 5e-2 and max_err_h < 5e-2, (max_err, max_err_h)

    print("KERNEL_OK")
</pallas_src>

<mosaic_0001>
module attributes {stable_mosaic.version = 11 : i64} {
  func.func @_encode_project_kernel(%arg0: i32, %arg1: i32, %arg2: memref<16x16xbf16, #tpu.memory_space<vmem>>, %arg3: memref<16x64xbf16, #tpu.memory_space<vmem>>, %arg4: memref<8x128xbf16, #tpu.memory_space<vmem>>, %arg5: memref<128x384xbf16, #tpu.memory_space<vmem>>, %arg6: memref<1x384xf32, #tpu.memory_space<vmem>>, %arg7: memref<8x16x384xbf16, #tpu.memory_space<vmem>>, %arg8: memref<128x8xbf16, #tpu.memory_space<vmem>>) attributes {dimension_semantics = [#tpu.dimension_semantics<parallel>, #tpu.dimension_semantics<parallel>], iteration_bounds = array<i64: 1, 1>, scalar_prefetch = 0 : i64, scratch_operands = 1 : i64, tpu.core_type = #tpu.core_type<tc>, window_params = [{transform_indices = @transform_0, window_bounds = array<i64: 16, 16>}, {transform_indices = @transform_1, window_bounds = array<i64: 16, 64>}, {pipeline_mode = #tpu.pipeline_mode<synchronous>, transform_indices = @transform_2, window_bounds = array<i64: 8, 128>}, {pipeline_mode = #tpu.pipeline_mode<synchronous>, transform_indices = @transform_3, window_bounds = array<i64: 128, 384>}, {pipeline_mode = #tpu.pipeline_mode<synchronous>, transform_indices = @transform_4, window_bounds = array<i64: 1, 384>}, {transform_indices = @transform_5, window_bounds = array<i64: 8, 16, 384>}]} {
    %c0 = arith.constant 0 : index
    %c0_0 = arith.constant 0 : index
    %0 = vector.load %arg2[%c0, %c0_0] : memref<16x16xbf16, #tpu.memory_space<vmem>>, vector<16x16xbf16>
    %c0_1 = arith.constant 0 : index
    %c0_2 = arith.constant 0 : index
    %1 = vector.load %arg3[%c0_1, %c0_2] : memref<16x64xbf16, #tpu.memory_space<vmem>>, vector<16x64xbf16>
    %cst = arith.constant dense<0.000000e+00> : vector<16x64xf32>
    %2 = tpu.matmul %0, %1, %cst {dimension_numbers = #tpu.dot_dimension_numbers<[1], [0], [0], [1], [0, 0, 1, 1], [], []>} : vector<16x16xbf16>, vector<16x64xbf16>, vector<16x64xf32> -> vector<16x64xf32>
    %3 = vector.extract_strided_slice %2 {offsets = [0, 0], sizes = [16, 8], strides = [1, 1]} : vector<16x64xf32> to vector<16x8xf32>
    %4 = arith.truncf %3 : vector<16x8xf32> to vector<16x8xbf16>
    %c0_3 = arith.constant 0 : index
    %c0_4 = arith.constant 0 : index
    %5 = vector.load %arg8[%c0_3, %c0_4] : memref<128x8xbf16, #tpu.memory_space<vmem>>, vector<16x8xbf16>
    tpu.vector_store %arg8[%c0_3, %c0_4], %4 {strides = array<i32>} : memref<128x8xbf16, #tpu.memory_space<vmem>>, vector<16x8xbf16>,
    %6 = vector.extract_strided_slice %2 {offsets = [0, 8], sizes = [16, 8], strides = [1, 1]} : vector<16x64xf32> to vector<16x8xf32>
    %7 = arith.truncf %6 : vector<16x8xf32> to vector<16x8xbf16>
    %c16 = arith.constant 16 : index
    %c0_5 = arith.constant 0 : index
    %8 = vector.load %arg8[%c16, %c0_5] : memref<128x8xbf16, #tpu.memory_space<vmem>>, vector<16x8xbf16>
    tpu.vector_store %arg8[%c16, %c0_5], %7 {strides = array<i32>} : memref<128x8xbf16, #tpu.memory_space<vmem>>, vector<16x8xbf16>,
    %9 = vector.extract_strided_slice %2 {offsets = [0, 16], sizes = [16, 8], strides = [1, 1]} : vector<16x64xf32> to vector<16x8xf32>
    %10 = arith.truncf %9 : vector<16x8xf32> to vector<16x8xbf16>
    %c32 = arith.constant 32 : index
    %c0_6 = arith.constant 0 : index
    %11 = vector.load %arg8[%c32, %c0_6] : memref<128x8xbf16, #tpu.memory_space<vmem>>, vector<16x8xbf16>
    tpu.vector_store %arg8[%c32, %c0_6], %10 {strides = array<i32>} : memref<128x8xbf16, #tpu.memory_space<vmem>>, vector<16x8xbf16>,
    %12 = vector.extract_strided_slice %2 {offsets = [0, 24], sizes = [16, 8], strides = [1, 1]} : vector<16x64xf32> to vector<16x8xf32>
    %13 = arith.truncf %12 : vector<16x8xf32> to vector<16x8xbf16>
    %c48 = arith.constant 48 : index
    %c0_7 = arith.constant 0 : index
    %14 = vector.load %arg8[%c48, %c0_7] : memref<128x8xbf16, #tpu.memory_space<vmem>>, vector<16x8xbf16>
    tpu.vector_store %arg8[%c48, %c0_7], %13 {strides = array<i32>} : memref<128x8xbf16, #tpu.memory_space<vmem>>, vector<16x8xbf16>,
    %15 = vector.extract_strided_slice %2 {offsets = [0, 32], sizes = [16, 8], strides = [1, 1]} : vector<16x64xf32> to vector<16x8xf32>
    %16 = arith.truncf %15 : vector<16x8xf32> to vector<16x8xbf16>
    %c64 = arith.constant 64 : index
    %c0_8 = arith.constant 0 : index
    %17 = vector.load %arg8[%c64, %c0_8] : memref<128x8xbf16, #tpu.memory_space<vmem>>, vector<16x8xbf16>
    tpu.vector_store %arg8[%c64, %c0_8], %16 {strides = array<i32>} : memref<128x8xbf16, #tpu.memory_space<vmem>>, vector<16x8xbf16>,
    %18 = vector.extract_strided_slice %2 {offsets = [0, 40], sizes = [16, 8], strides = [1, 1]} : vector<16x64xf32> to vector<16x8xf32>
    %19 = arith.truncf %18 : vector<16x8xf32> to vector<16x8xbf16>
    %c80 = arith.constant 80 : index
    %c0_9 = arith.constant 0 : index
    %20 = vector.load %arg8[%c80, %c0_9] : memref<128x8xbf16, #tpu.memory_space<vmem>>, vector<16x8xbf16>
    tpu.vector_store %arg8[%c80, %c0_9], %19 {strides = array<i32>} : memref<128x8xbf16, #tpu.memory_space<vmem>>, vector<16x8xbf16>,
    %21 = vector.extract_strided_slice %2 {offsets = [0, 48], sizes = [16, 8], strides = [1, 1]} : vector<16x64xf32> to vector<16x8xf32>
    %22 = arith.truncf %21 : vector<16x8xf32> to vector<16x8xbf16>
    %c96 = arith.constant 96 : index
    %c0_10 = arith.constant 0 : index
    %23 = vector.load %arg8[%c96, %c0_10] : memref<128x8xbf16, #tpu.memory_space<vmem>>, vector<16x8xbf16>
    tpu.vector_store %arg8[%c96, %c0_10], %22 {strides = array<i32>} : memref<128x8xbf16, #tpu.memory_space<vmem>>, vector<16x8xbf16>,
    %24 = vector.extract_strided_slice %2 {offsets = [0, 56], sizes = [16, 8], strides = [1, 1]} : vector<16x64xf32> to vector<16x8xf32>
    %25 = arith.truncf %24 : vector<16x8xf32> to vector<16x8xbf16>
    %c112 = arith.constant 112 : index
    %c0_11 = arith.constant 0 : index
    %26 = vector.load %arg8[%c112, %c0_11] : memref<128x8xbf16, #tpu.memory_space<vmem>>, vector<16x8xbf16>
    tpu.vector_store %arg8[%c112, %c0_11], %25 {strides = array<i32>} : memref<128x8xbf16, #tpu.memory_space<vmem>>, vector<16x8xbf16>,
    %c0_12 = arith.constant 0 : index
    %c0_13 = arith.constant 0 : index
    %27 = vector.load %arg8[%c0_12, %c0_13] : memref<128x8xbf16, #tpu.memory_space<vmem>>, vector<128x8xbf16>
    %c0_14 = arith.constant 0 : index
    %c0_15 = arith.constant 0 : index
    %28 = vector.load %arg4[%c0_14, %c0_15] : memref<8x128xbf16, #tpu.memory_space<vmem>>, vector<8x128xbf16>
    %cst_16 = arith.constant dense<0.000000e+00> : vector<128x128xf32>
    %29 = tpu.matmul %27, %28, %cst_16 {dimension_numbers = #tpu.dot_dimension_numbers<[1], [0], [0], [1], [0, 0, 1, 1], [], []>} : vector<128x8xbf16>, vector<8x128xbf16>, vector<128x128xf32> -> vector<128x128xf32>
    %cst_17 = arith.constant 0.000000e+00 : f32
    %30 = vector.broadcast %cst_17 : f32 to vector<128x128xf32>
    %31 = arith.maximumf %29, %30 : vector<128x128xf32>
    %32 = arith.truncf %31 : vector<128x128xf32> to vector<128x128xbf16>
    %c0_18 = arith.constant 0 : index
    %c0_19 = arith.constant 0 : index
    %33 = vector.load %arg5[%c0_18, %c0_19] : memref<128x384xbf16, #tpu.memory_space<vmem>>, vector<128x384xbf16>
    %cst_20 = arith.constant dense<0.000000e+00> : vector<128x384xf32>
    %34 = tpu.matmul %32, %33, %cst_20 {dimension_numbers = #tpu.dot_dimension_numbers<[1], [0], [0], [1], [0, 0, 1, 1], [], []>} : vector<128x128xbf16>, vector<128x384xbf16>, vector<128x384xf32> -> vector<128x384xf32>
    %c0_21 = arith.constant 0 : index
    %c0_22 = arith.constant 0 : index
    %35 = vector.load %arg6[%c0_21, %c0_22] : memref<1x384xf32, #tpu.memory_space<vmem>>, vector<1x384xf32>
    %36 = vector.broadcast %35 : vector<1x384xf32> to vector<128x384xf32>
    %37 = arith.addf %34, %36 : vector<128x384xf32>
    %38 = vector.shape_cast %37 : vector<128x384xf32> to vector<8x16x384xf32>
    %39 = arith.truncf %38 : vector<8x16x384xf32> to vector<8x16x384xbf16>
    %c0_23 = arith.constant 0 : index
    %c0_24 = arith.constant 0 : index
    %c0_25 = arith.constant 0 : index
    %40 = vector.load %arg7[%c0_23, %c0_24, %c0_25] : memref<8x16x384xbf16, #tpu.memory_space<vmem>>, vector<8x16x384xbf16>
    tpu.vector_store %arg7[%c0_23, %c0_24, %c0_25], %39 {strides = array<i32>} : memref<8x16x384xbf16, #tpu.memory_space<vmem>>, vector<8x16x384xbf16>,
    return
  }
  func.func @transform_0(%arg0: i32, %arg1: i32) -> (i32, i32) {
    %c0_i32 = arith.constant 0 : i32
    %c0_i32_0 = arith.constant 0 : i32
    return %arg0, %c0_i32 : i32, i32
  }
  func.func @transform_1(%arg0: i32, %arg1: i32) -> (i32, i32) {
    %c0_i32 = arith.constant 0 : i32
    %c0_i32_0 = arith.constant 0 : i32
    return %c0_i32, %arg1 : i32, i32
  }
  func.func @transform_2(%arg0: i32, %arg1: i32) -> (i32, i32) {
    %c0_i32 = arith.constant 0 : i32
    %c0_i32_0 = arith.constant 0 : i32
    %c0_i32_1 = arith.constant 0 : i32
    return %c0_i32, %c0_i32_0 : i32, i32
  }
  func.func @transform_3(%arg0: i32, %arg1: i32) -> (i32, i32) {
    %c0_i32 = arith.constant 0 : i32
    %c0_i32_0 = arith.constant 0 : i32
    %c0_i32_1 = arith.constant 0 : i32
    return %c0_i32, %c0_i32_0 : i32, i32
  }
  func.func @transform_4(%arg0: i32, %arg1: i32) -> (i32, i32) {
    %c0_i32 = arith.constant 0 : i32
    %c0_i32_0 = arith.constant 0 : i32
    %c0_i32_1 = arith.constant 0 : i32
    return %c0_i32, %c0_i32_0 : i32, i32
  }
  func.func @transform_5(%arg0: i32, %arg1: i32) -> (i32, i32, i32) {
    %c0_i32 = arith.constant 0 : i32
    %c0_i32_0 = arith.constant 0 : i32
    return %arg1, %arg0, %c0_i32 : i32, i32, i32
  }
}

</mosaic_0001>

<llo_original>
// kernel: tpu_custom_call.1
$region0: #{tpu_custom_call.1}
  #allocation0 [shape = 'u32[]', space=smem, size = 0x4, offset = 0x4, fixed_abs, tag = 'smem constant byte address 0x4 - core index']
  #allocation1 [shape = 'u32[144,128]{1,0:T(1,128)}', space=vmem, size = 0x12000, scoped, tag = 'internal scratch']
  #allocation2 [shape = 'bf16[128,8]{1,0:T(16,128)(2,1)}', space=vmem, size = 0x8000, scoped, tag = 'scratch operand']
  %s0 = inlined_call_operand.hbm [shape: bf16[16,16], index: 0, kind: input, shape index: {}]
  %s1 = inlined_call_operand.hbm [shape: bf16[16,64], index: 1, kind: input, shape index: {}]
  %s2 = inlined_call_operand.vmem [shape: bf16[8,128], index: 2, kind: input, shape index: {}]
  %s3 = inlined_call_operand.hbm [shape: bf16[128,384], index: 3, kind: input, shape index: {}]
  %s4 = inlined_call_operand.vmem [shape: f32[1,384], index: 4, kind: input, shape index: {}]
  %s5 = inlined_call_operand.hbm [shape: bf16[8,16,384], index: 5, kind: output, shape index: {}]
  %s6 = sld [smem:[#allocation0]]
  $region42: #{tpu_custom_call.1} parent=0
    _
  %s8 = ssub.s32 1, %s6
  %s9 = scalar_select 0, %s8, %s6
  $region1: #{tpu_custom_call.1} parent=0
    #allocation3 [shape = 'u8[4096]{0}', space=vmem, size = 0x1000, scoped, tag = 'input window, operand 0, single buffered']
    #allocation4 [shape = 's32[1]{0}', space=sflag, size = 0x4, scoped, tag = 'scoped memory for tpu_custom_call.1']
    #allocation5 [shape = 's32[1]{0}', space=sflag, size = 0x4, scoped, tag = 'scoped memory for tpu_custom_call.1']
    #allocation6 [shape = 'u8[4096]{0}', space=vmem, size = 0x1000, scoped, tag = 'input window, operand 1, single buffered']
    #allocation7 [shape = 's32[1]{0}', space=sflag, size = 0x4, scoped, tag = 'scoped memory for tpu_custom_call.1']
    #allocation8 [shape = 'u8[98304]{0}', space=vmem, size = 0x18000, scoped, tag = 'input window, operand 3, single buffered']
    #allocation9 [shape = 'u8[98304]{0}', space=vmem, size = 0x18000, scoped, tag = 'output window, operand 0, single buffered']
    %10 = vsyncpa [#allocation4], 0
    %11 = vsyncpa [#allocation7], 0
    %12 = vsyncpa [#allocation5], 0
    // Predicated region
    $region2: #{tpu_custom_call.1} parent=1 // pred_check
      _
    $region3: #{tpu_custom_call.1} parent=1 // pred_check_branch
      %14 = sbr.rel (0) target = $region5
    $region4: #{tpu_custom_call.1} parent=1 // pred_region
      %s16 = ssub.s32 128, 128
      %17 = vsyncadd [#allocation4], %s16
      %s18 = sshll.u32 [#allocation3], 4
      %s19 = int_to_ptr.vmem [resolvable:$true] %s18
      %24 = dma.hbm_to_vmem [thread:$0]  %s0, 128, %s19, [#allocation4], 64, 64, 4
    $region5: #{tpu_custom_call.1} parent=1 // pred_fallthru
      _
    // Predicated region
    $region6: #{tpu_custom_call.1} parent=1 // pred_check
      _
    $region7: #{tpu_custom_call.1} parent=1 // pred_check_branch
      %26 = sbr.rel (0) target = $region9
    $region8: #{tpu_custom_call.1} parent=1 // pred_region
      %s28 = ssub.s32 128, 128
      %29 = vsyncadd [#allocation7], %s28
      %s30 = sshll.u32 [#allocation6], 4
      %s31 = int_to_ptr.vmem [resolvable:$true] %s30
      %36 = dma.hbm_to_vmem [thread:$0]  %s1, 128, %s31, [#allocation7], 64, 64, 4
    $region9: #{tpu_custom_call.1} parent=1 // pred_fallthru
      _
    // Predicated region
    $region10: #{tpu_custom_call.1} parent=1 // pred_check
      _
    $region11: #{tpu_custom_call.1} parent=1 // pred_check_branch
      %38 = sbr.rel (0) target = $region13
    $region12: #{tpu_custom_call.1} parent=1 // pred_region
      _
    $region13: #{tpu_custom_call.1} parent=1 // pred_fallthru
      _
    // Predicated region
    $region14: #{tpu_custom_call.1} parent=1 // pred_check
      _
    $region15: #{tpu_custom_call.1} parent=1 // pred_check_branch
      %40 = sbr.rel (0) target = $region17
    $region16: #{tpu_custom_call.1} parent=1 // pred_region
      %s42 = ssub.s32 3072, 3072
      %43 = vsyncadd [#allocation7], %s42
      %s44 = sshll.u32 [#allocation8], 4
      %s45 = int_to_ptr.vmem [resolvable:$true] %s44
      %50 = dma.hbm_to_vmem [thread:$0]  %s3, 3072, %s45, [#allocation7], 192, 192, 12
    $region17: #{tpu_custom_call.1} parent=1 // pred_fallthru
      _
    // Predicated region
    $region18: #{tpu_custom_call.1} parent=1 // pred_check
      _
    $region19: #{tpu_custom_call.1} parent=1 // pred_check_branch
      %52 = sbr.rel (0) target = $region21
    $region20: #{tpu_custom_call.1} parent=1 // pred_region
      _
    $region21: #{tpu_custom_call.1} parent=1 // pred_fallthru
      _
    // Predicated region
    $region22: #{tpu_custom_call.1} parent=1 // pred_check
      _
    $region23: #{tpu_custom_call.1} parent=1 // pred_check_branch
      %54 = sbr.rel (0) target = $region25
    $region24: #{tpu_custom_call.1} parent=1 // pred_region
      %55 = dma.done [#allocation4], 128
    $region25: #{tpu_custom_call.1} parent=1 // pred_fallthru
      _
    // Predicated region
    $region26: #{tpu_custom_call.1} parent=1 // pred_check
      _
    $region27: #{tpu_custom_call.1} parent=1 // pred_check_branch
      %57 = sbr.rel (0) target = $region29
    $region28: #{tpu_custom_call.1} parent=1 // pred_region
      %58 = dma.done [#allocation7], 128
    $region29: #{tpu_custom_call.1} parent=1 // pred_fallthru
      _
    // Predicated region
    $region30: #{tpu_custom_call.1} parent=1 // pred_check
      _
    $region31: #{tpu_custom_call.1} parent=1 // pred_check_branch
      %60 = sbr.rel (0) target = $region33
    $region32: #{tpu_custom_call.1} parent=1 // pred_region
      %61 = dma.done [#allocation7], 3072
    $region33: #{tpu_custom_call.1} parent=1 // pred_fallthru
      _
    %v63 = vld [vmem:[#allocation3] sm:$0xf]
    %v64 = vld [vmem:[#allocation3 + $0x4] sm:$0xf]
    %v65 = vld [vmem:[#allocation6] sm:$0xf]
    %v66 = vld [vmem:[#allocation6 + $0x4] sm:$0xf]
    %v69 = vunpack.c.l.b16 %v63
    %v70 = vunpack.c.l.b16 %v64
    %v71 = vpack.c.b16 %v70, %v69
    %v74 = vunpack.c.l.b16 %v65
    %v75 = vunpack.c.l.b16 %v66
    %v76 = vpack.c.b16 %v75, %v74
    %vm78 = vcmask 130048
    %v80 = vsel %vm78, %v71, 0
    %82 = vmatprep.subr.bf16.mxu0 0
    %83 = vmatpush1.bf16.msra.mxu0 %v76
    %84 = vmatprep.subr.bf16.mxu0 0
    %85 = vmatpush1.bf16.msra.mxu0 0
    %86 = vmatprep.subr.bf16.mxu0 0
    %87 = vmatpush1.bf16.msra.mxu0 0
    %88 = vmatprep.subr.bf16.mxu0 0
    %89 = vmatpush1.bf16.msra.mxu0 0
    %90 = vmatprep.subr.bf16.mxu0 0
    %91 = vmatpush1.bf16.msra.mxu0 0
    %92 = vmatprep.subr.bf16.mxu0 0
    %93 = vmatpush1.bf16.msra.mxu0 0
    %94 = vmatprep.subr.bf16.mxu0 0
    %95 = vmatpush1.bf16.msra.mxu0 0
    %96 = vmatprep.subr.bf16.mxu0 0
    %97 = vmatpush1.bf16.msra.mxu0 0
    %98 = vmatprep.subr.bf16.mxu0 0
    %99 = vmatpush1.bf16.msra.mxu0 0
    %100 = vmatprep.subr.bf16.mxu0 0
    %101 = vmatpush1.bf16.msra.mxu0 0
    %102 = vmatprep.subr.bf16.mxu0 0
    %103 = vmatpush1.bf16.msra.mxu0 0
    %104 = vmatprep.subr.bf16.mxu0 0
    %105 = vmatpush1.bf16.msra.mxu0 0
    %106 = vmatprep.subr.bf16.mxu0 0
    %107 = vmatpush1.bf16.msra.mxu0 0
    %108 = vmatprep.subr.bf16.mxu0 0
    %109 = vmatpush1.bf16.msra.mxu0 0
    %110 = vmatprep.subr.bf16.mxu0 0
    %111 = vmatpush1.bf16.msra.mxu0 0
    %112 = vmatprep.subr.bf16.mxu0 0
    %113 = vmatpush1.bf16.msra.mxu0 0
    %114 = vmatprep.mubr.bf16.mxu0 0
    %115 = vmatmul.mubr.bf16.gmra.mrb[0].mxu0 %v80
    %v116 = vpop.f32.mrb[0].mxu0
    %v117 = vadd.f32 0.0, %v116
    %v118 = vpop.f32.mrb[0].mxu0
    %v119 = vpop.f32.mrb[0].mxu0
    %v120 = vadd.f32 0.0, %v119
    %v121 = vpop.f32.mrb[0].mxu0
    %122 = vdwg.mxu0
    %v123 = vpack.c.bf16 %v120, %v117
    %vm124 = vcmask 64512
    %125 = vst.msk [vmem:[#allocation2] sm:$0xff] %vm124, %v123
    %127 = vrot.lane.b32.xlu0 %v123, 120
    %v128 = vpop.permute.xlu0 %127
    %130 = vst.msk [vmem:[#allocation2 + $0x8] sm:$0xff] %vm124, %v128
    %131 = vrot.lane.b32.xlu0 %v123, 112
    %v132 = vpop.permute.xlu0 %131
    %134 = vst.msk [vmem:[#allocation2 + $0x10] sm:$0xff] %vm124, %v132
    %135 = vrot.lane.b32.xlu0 %v123, 104
    %v136 = vpop.permute.xlu0 %135
    %138 = vst.msk [vmem:[#allocation2 + $0x18] sm:$0xff] %vm124, %v136
    %139 = vrot.lane.b32.xlu0 %v123, 96
    %v140 = vpop.permute.xlu0 %139
    %142 = vst.msk [vmem:[#allocation2 + $0x20] sm:$0xff] %vm124, %v140
    %143 = vrot.lane.b32.xlu0 %v123, 88
    %v144 = vpop.permute.xlu0 %143
    %146 = vst.msk [vmem:[#allocation2 + $0x28] sm:$0xff] %vm124, %v144
    %147 = vrot.lane.b32.xlu0 %v123, 80
    %v148 = vpop.permute.xlu0 %147
    %150 = vst.msk [vmem:[#allocation2 + $0x30] sm:$0xff] %vm124, %v148
    %151 = vrot.lane.b32.xlu0 %v123, 72
    %v152 = vpop.permute.xlu0 %151
    %154 = vst.msk [vmem:[#allocation2 + $0x38] sm:$0xff] %vm124, %v152
    %v155 = vld [vmem:[#allocation2] sm:$0xff]
    %v156 = vld [vmem:[#allocation2 + $0x8] sm:$0xff]
    %v157 = vld [vmem:[#allocation2 + $0x10] sm:$0xff]
    %v158 = vld [vmem:[#allocation2 + $0x18] sm:$0xff]
    %v159 = vld [vmem:[#allocation2 + $0x20] sm:$0xff]
    %v160 = vld [vmem:[#allocation2 + $0x28] sm:$0xff]
    %v161 = vld [vmem:[#allocation2 + $0x30] sm:$0xff]
    %v162 = vld [vmem:[#allocation2 + $0x38] sm:$0xff]
    %v163 = vld [vmem:[%s2] sm:$0xf]
    %v165 = vsel %vm124, %v155, 0
    %v168 = vsel %vm124, %v156, 0
    %v171 = vsel %vm124, %v157, 0
    %v174 = vsel %vm124, %v158, 0
    %v177 = vsel %vm124, %v159, 0
    %v180 = vsel %vm124, %v160, 0
    %v183 = vsel %vm124, %v161, 0
    %v186 = vsel %vm124, %v162, 0
    %vm188 = vcmask 1043456
    %v190 = vsel %vm188, %v163, 0
    %192 = vmatprep.subr.bf16.mxu0 0
    %193 = vmatpush1.bf16.msra.mxu0 %v190
    %194 = vmatprep.subr.bf16.mxu0 0
    %195 = vmatpush1.bf16.msra.mxu0 0
    %196 = vmatprep.subr.bf16.mxu0 0
    %197 = vmatpush1.bf16.msra.mxu0 0
    %198 = vmatprep.subr.bf16.mxu0 0
    %199 = vmatpush1.bf16.msra.mxu0 0
    %200 = vmatprep.subr.bf16.mxu0 0
    %201 = vmatpush1.bf16.msra.mxu0 0
    %202 = vmatprep.subr.bf16.mxu0 0
    %203 = vmatpush1.bf16.msra.mxu0 0
    %204 = vmatprep.subr.bf16.mxu0 0
    %205 = vmatpush1.bf16.msra.mxu0 0
    %206 = vmatprep.subr.bf16.mxu0 0
    %207 = vmatpush1.bf16.msra.mxu0 0
    %208 = vmatprep.subr.bf16.mxu0 0
    %209 = vmatpush1.bf16.msra.mxu0 0
    %210 = vmatprep.subr.bf16.mxu0 0
    %211 = vmatpush1.bf16.msra.mxu0 0
    %212 = vmatprep.subr.bf16.mxu0 0
    %213 = vmatpush1.bf16.msra.mxu0 0
    %214 = vmatprep.subr.bf16.mxu0 0
    %215 = vmatpush1.bf16.msra.mxu0 0
    %216 = vmatprep.subr.bf16.mxu0 0
    %217 = vmatpush1.bf16.msra.mxu0 0
    %218 = vmatprep.subr.bf16.mxu0 0
    %219 = vmatpush1.bf16.msra.mxu0 0
    %220 = vmatprep.subr.bf16.mxu0 0
    %221 = vmatpush1.bf16.msra.mxu0 0
    %222 = vmatprep.subr.bf16.mxu0 0
    %223 = vmatpush1.bf16.msra.mxu0 0
    %224 = vmatprep.mubr.bf16.mxu0 0
    %225 = vmatmul.mubr.bf16.gmra.mrb[0].mxu0 %v165
    %v226 = vpop.f32.mrb[0].mxu0
    %v227 = vadd.f32 0.0, %v226
    %v228 = vpop.f32.mrb[0].mxu0
    %v229 = vpop.f32.mrb[0].mxu0
    %v230 = vadd.f32 0.0, %v229
    %v231 = vpop.f32.mrb[0].mxu0
    %232 = vmatprep.mubr.bf16.mxu0 0
    %233 = vmatmul.mubr.bf16.gmra.mrb[0].mxu0 %v168
    %v234 = vpop.f32.mrb[0].mxu0
    %v235 = vadd.f32 0.0, %v234
    %v236 = vpop.f32.mrb[0].mxu0
    %v237 = vpop.f32.mrb[0].mxu0
    %v238 = vadd.f32 0.0, %v237
    %v239 = vpop.f32.mrb[0].mxu0
    %240 = vmatprep.mubr.bf16.mxu0 0
    %241 = vmatmul.mubr.bf16.gmra.mrb[0].mxu0 %v171
    %v242 = vpop.f32.mrb[0].mxu0
    %v243 = vadd.f32 0.0, %v242
    %v244 = vpop.f32.mrb[0].mxu0
    %v245 = vpop.f32.mrb[0].mxu0
    %v246 = vadd.f32 0.0, %v245
    %v247 = vpop.f32.mrb[0].mxu0
    %248 = vmatprep.mubr.bf16.mxu0 0
    %249 = vmatmul.mubr.bf16.gmra.mrb[0].mxu0 %v174
    %v250 = vpop.f32.mrb[0].mxu0
    %v251 = vadd.f32 0.0, %v250
    %v252 = vpop.f32.mrb[0].mxu0
    %v253 = vpop.f32.mrb[0].mxu0
    %v254 = vadd.f32 0.0, %v253
    %v255 = vpop.f32.mrb[0].mxu0
    %256 = vmatprep.mubr.bf16.mxu0 0
    %257 = vmatmul.mubr.bf16.gmra.mrb[0].mxu0 %v177
    %v258 = vpop.f32.mrb[0].mxu0
    %v259 = vadd.f32 0.0, %v258
    %v260 = vpop.f32.mrb[0].mxu0
    %v261 = vpop.f32.mrb[0].mxu0
    %v262 = vadd.f32 0.0, %v261
    %v263 = vpop.f32.mrb[0].mxu0
    %264 = vmatprep.mubr.bf16.mxu0 0
    %265 = vmatmul.mubr.bf16.gmra.mrb[0].mxu0 %v180
    %v266 = vpop.f32.mrb[0].mxu0
    %v267 = vadd.f32 0.0, %v266
    %v268 = vpop.f32.mrb[0].mxu0
    %v269 = vpop.f32.mrb[0].mxu0
    %v270 = vadd.f32 0.0, %v269
    %v271 = vpop.f32.mrb[0].mxu0
    %272 = vmatprep.mubr.bf16.mxu0 0
    %273 = vmatmul.mubr.bf16.gmra.mrb[0].mxu0 %v183
    %v274 = vpop.f32.mrb[0].mxu0
    %v275 = vadd.f32 0.0, %v274
    %v276 = vpop.f32.mrb[0].mxu0
    %v277 = vpop.f32.mrb[0].mxu0
    %v278 = vadd.f32 0.0, %v277
    %v279 = vpop.f32.mrb[0].mxu0
    %280 = vmatprep.mubr.bf16.mxu0 0
    %281 = vmatmul.mubr.bf16.gmra.mrb[0].mxu0 %v186
    %v282 = vpop.f32.mrb[0].mxu0
    %v283 = vadd.f32 0.0, %v282
    %v284 = vpop.f32.mrb[0].mxu0
    %v285 = vpop.f32.mrb[0].mxu0
    %v286 = vadd.f32 0.0, %v285
    %v287 = vpop.f32.mrb[0].mxu0
    %288 = vdwg.mxu0
    %v289 = vmax.f32 %v227, 0.0
    %v290 = vmax.f32 %v230, 0.0
    %v291 = vmax.f32 %v235, 0.0
    %v292 = vmax.f32 %v238, 0.0
    %v293 = vmax.f32 %v243, 0.0
    %v294 = vmax.f32 %v246, 0.0
    %v295 = vmax.f32 %v251, 0.0
    %v296 = vmax.f32 %v254, 0.0
    %v297 = vmax.f32 %v259, 0.0
    %v298 = vmax.f32 %v262, 0.0
    %v299 = vmax.f32 %v267, 0.0
    %v300 = vmax.f32 %v270, 0.0
    %v301 = vmax.f32 %v275, 0.0
    %v302 = vmax.f32 %v278, 0.0
    %v303 = vmax.f32 %v283, 0.0
    %v304 = vmax.f32 %v286, 0.0
    %v305 = vpack.c.bf16 %v290, %v289
    %v306 = vpack.c.bf16 %v292, %v291
    %v307 = vpack.c.bf16 %v294, %v293
    %v308 = vpack.c.bf16 %v296, %v295
    %v309 = vpack.c.bf16 %v298, %v297
    %v310 = vpack.c.bf16 %v300, %v299
    %v311 = vpack.c.bf16 %v302, %v301
    %v312 = vpack.c.bf16 %v304, %v303
    %v313 = vld [vmem:[#allocation8] sm:$0xff]
    %v314 = vld [vmem:[#allocation8 + $0x8] sm:$0xf]
    %v315 = vld [vmem:[#allocation8 + $0xc] sm:$0xff]
    %v316 = vld [vmem:[#allocation8 + $0x14] sm:$0xf]
    %v317 = vld [vmem:[#allocation8 + $0x18] sm:$0xff]
    %v318 = vld [vmem:[#allocation8 + $0x20] sm:$0xf]
    %v319 = vld [vmem:[#allocation8 + $0x24] sm:$0xff]
    %v320 = vld [vmem:[#allocation8 + $0x2c] sm:$0xf]
    %v321 = vld [vmem:[#allocation8 + $0x30] sm:$0xff]
    %v322 = vld [vmem:[#allocation8 + $0x38] sm:$0xf]
    %v323 = vld [vmem:[#allocation8 + $0x3c] sm:$0xff]
    %v324 = vld [vmem:[#allocation8 + $0x44] sm:$0xf]
    %v325 = vld [vmem:[#allocation8 + $0x48] sm:$0xff]
    %v326 = vld [vmem:[#allocation8 + $0x50] sm:$0xf]
    %v327 = vld [vmem:[#allocation8 + $0x54] sm:$0xff]
    %v328 = vld [vmem:[#allocation8 + $0x5c] sm:$0xf]
    %v329 = vld [vmem:[#allocation8 + $0x60] sm:$0xff]
    %v330 = vld [vmem:[#allocation8 + $0x68] sm:$0xf]
    %v331 = vld [vmem:[#allocation8 + $0x6c] sm:$0xff]
    %v332 = vld [vmem:[#allocation8 + $0x74] sm:$0xf]
    %v333 = vld [vmem:[#allocation8 + $0x78] sm:$0xff]
    %v334 = vld [vmem:[#allocation8 + $0x80] sm:$0xf]
    %v335 = vld [vmem:[#allocation8 + $0x84] sm:$0xff]
    %v336 = vld [vmem:[#allocation8 + $0x8c] sm:$0xf]
    %v337 = vld [vmem:[#allocation8 + $0x90] sm:$0xff]
    %v338 = vld [vmem:[#allocation8 + $0x98] sm:$0xf]
    %v339 = vld [vmem:[#allocation8 + $0x9c] sm:$0xff]
    %v340 = vld [vmem:[#allocation8 + $0xa4] sm:$0xf]
    %v341 = vld [vmem:[#allocation8 + $0xa8] sm:$0xff]
    %v342 = vld [vmem:[#allocation8 + $0xb0] sm:$0xf]
    %v343 = vld [vmem:[#allocation8 + $0xb4] sm:$0xff]
    %v344 = vld [vmem:[#allocation8 + $0xbc] sm:$0xf]
    %v345 = vld [vmem:[%s4] sm:$0x7]
    %v347 = vlaneseq
    %v348 = vshrl.u32 %v347, 7
    %v349 = vsub.s32 0, %v348
    %v350 = vrot.slane %v345, %v349
    %v351 = vlaneseq
    %v352 = vshrl.u32 %v351, 7
    %v353 = vsub.s32 1, %v352
    %v354 = vrot.slane %v345, %v353
    %v355 = vlaneseq
    %v356 = vshrl.u32 %v355, 7
    %v357 = vsub.s32 2, %v356
    %v358 = vrot.slane %v345, %v357
    %v394 = vunpack.c.l.b16 %v313
    %v395 = vunpack.c.h.b16 %v313
    %v396 = vunpack.c.l.b16 %v314
    %v397 = vunpack.c.l.b16 %v315
    %v398 = vunpack.c.h.b16 %v315
    %v399 = vunpack.c.l.b16 %v316
    %v400 = vunpack.c.l.b16 %v317
    %v401 = vunpack.c.h.b16 %v317
    %v402 = vunpack.c.l.b16 %v318
    %v403 = vunpack.c.l.b16 %v319
    %v404 = vunpack.c.h.b16 %v319
    %v405 = vunpack.c.l.b16 %v320
    %v406 = vunpack.c.l.b16 %v321
    %v407 = vunpack.c.h.b16 %v321
    %v408 = vunpack.c.l.b16 %v322
    %v409 = vunpack.c.l.b16 %v323
    %v410 = vunpack.c.h.b16 %v323
    %v411 = vunpack.c.l.b16 %v324
    %v412 = vunpack.c.l.b16 %v325
    %v413 = vunpack.c.h.b16 %v325
    %v414 = vunpack.c.l.b16 %v326
    %v415 = vunpack.c.l.b16 %v327
    %v416 = vunpack.c.h.b16 %v327
    %v417 = vunpack.c.l.b16 %v328
    %v418 = vunpack.c.l.b16 %v329
    %v419 = vunpack.c.h.b16 %v329
    %v420 = vunpack.c.l.b16 %v330
    %v421 = vunpack.c.l.b16 %v331
    %v422 = vunpack.c.h.b16 %v331
    %v423 = vunpack.c.l.b16 %v332
    %v424 = vunpack.c.l.b16 %v333
    %v425 = vunpack.c.h.b16 %v333
    %v426 = vunpack.c.l.b16 %v334
    %v427 = vunpack.c.l.b16 %v335
    %v428 = vunpack.c.h.b16 %v335
    %v429 = vunpack.c.l.b16 %v336
    %v430 = vunpack.c.l.b16 %v337
    %v431 = vunpack.c.h.b16 %v337
    %v432 = vunpack.c.l.b16 %v338
    %v433 = vunpack.c.l.b16 %v339
    %v434 = vunpack.c.h.b16 %v339
    %v435 = vunpack.c.l.b16 %v340
    %v436 = vunpack.c.l.b16 %v341
    %v437 = vunpack.c.h.b16 %v341
    %v438 = vunpack.c.l.b16 %v342
    %v439 = vunpack.c.l.b16 %v343
    %v440 = vunpack.c.h.b16 %v343
    %v441 = vunpack.c.l.b16 %v344
    %v442 = vpack.c.b16 %v397, %v394
    %v443 = vpack.c.b16 %v398, %v395
    %v444 = vpack.c.b16 %v399, %v396
    %v445 = vpack.c.b16 %v403, %v400
    %v446 = vpack.c.b16 %v404, %v401
    %v447 = vpack.c.b16 %v405, %v402
    %v448 = vpack.c.b16 %v409, %v406
    %v449 = vpack.c.b16 %v410, %v407
    %v450 = vpack.c.b16 %v411, %v408
    %v451 = vpack.c.b16 %v415, %v412
    %v452 = vpack.c.b16 %v416, %v413
    %v453 = vpack.c.b16 %v417, %v414
    %v454 = vpack.c.b16 %v421, %v418
    %v455 = vpack.c.b16 %v422, %v419
    %v456 = vpack.c.b16 %v423, %v420
    %v457 = vpack.c.b16 %v427, %v424
    %v458 = vpack.c.b16 %v428, %v425
    %v459 = vpack.c.b16 %v429, %v426
    %v460 = vpack.c.b16 %v433, %v430
    %v461 = vpack.c.b16 %v434, %v431
    %v462 = vpack.c.b16 %v435, %v432
    %v463 = vpack.c.b16 %v439, %v436
    %v464 = vpack.c.b16 %v440, %v437
    %v465 = vpack.c.b16 %v441, %v438
    %490 = vmatprep.subr.bf16.mxu0 %v443
    %491 = vmatpush1.bf16.msra.mxu0 %v442
    %492 = vmatprep.subr.bf16.mxu0 %v446
    %493 = vmatpush1.bf16.msra.mxu0 %v445
    %494 = vmatprep.subr.bf16.mxu0 %v449
    %495 = vmatpush1.bf16.msra.mxu0 %v448
    %496 = vmatprep.subr.bf16.mxu0 %v452
    %497 = vmatpush1.bf16.msra.mxu0 %v451
    %498 = vmatprep.subr.bf16.mxu0 %v455
    %499 = vmatpush1.bf16.msra.mxu0 %v454
    %500 = vmatprep.subr.bf16.mxu0 %v458
    %501 = vmatpush1.bf16.msra.mxu0 %v457
    %502 = vmatprep.subr.bf16.mxu0 %v461
    %503 = vmatpush1.bf16.msra.mxu0 %v460
    %504 = vmatprep.subr.bf16.mxu0 %v464
    %505 = vmatpush1.bf16.msra.mxu0 %v463
    %506 = vmatprep.subr.bf16.mxu0 0
    %507 = vmatpush1.bf16.msra.mxu0 0
    %508 = vmatprep.subr.bf16.mxu0 0
    %509 = vmatpush1.bf16.msra.mxu0 0
    %510 = vmatprep.subr.bf16.mxu0 0
    %511 = vmatpush1.bf16.msra.mxu0 0
    %512 = vmatprep.subr.bf16.mxu0 0
    %513 = vmatpush1.bf16.msra.mxu0 0
    %514 = vmatprep.subr.bf16.mxu0 0
    %515 = vmatpush1.bf16.msra.mxu0 0
    %516 = vmatprep.subr.bf16.mxu0 0
    %517 = vmatpush1.bf16.msra.mxu0 0
    %518 = vmatprep.subr.bf16.mxu0 0
    %519 = vmatpush1.bf16.msra.mxu0 0
    %520 = vmatprep.subr.bf16.mxu0 0
    %521 = vmatpush1.bf16.msra.mxu0 0
    %522 = vmatprep.mubr.bf16.mxu0 0
    %523 = vmatmul.mubr.bf16.gmra.mrb[0].mxu0 %v305
    %v524 = vpop.f32.mrb[0].mxu0
    %v525 = vadd.f32 %v350, %v524
    %v526 = vpop.f32.mrb[0].mxu0
    %v527 = vadd.f32 %v354, %v526
    %v528 = vpop.f32.mrb[0].mxu0
    %v529 = vadd.f32 %v350, %v528
    %v530 = vpop.f32.mrb[0].mxu0
    %v531 = vadd.f32 %v354, %v530
    %532 = vmatprep.mubr.bf16.mxu0 0
    %533 = vmatmul.mubr.bf16.gmra.mrb[0].mxu0 %v306
    %v534 = vpop.f32.mrb[0].mxu0
    %v535 = vadd.f32 %v350, %v534
    %v536 = vpop.f32.mrb[0].mxu0
    %v537 = vadd.f32 %v354, %v536
    %v538 = vpop.f32.mrb[0].mxu0
    %v539 = vadd.f32 %v350, %v538
    %v540 = vpop.f32.mrb[0].mxu0
    %v541 = vadd.f32 %v354, %v540
    %542 = vmatprep.mubr.bf16.mxu0 0
    %543 = vmatmul.mubr.bf16.gmra.mrb[0].mxu0 %v307
    %v544 = vpop.f32.mrb[0].mxu0
    %v545 = vadd.f32 %v350, %v544
    %v546 = vpop.f32.mrb[0].mxu0
    %v547 = vadd.f32 %v354, %v546
    %v548 = vpop.f32.mrb[0].mxu0
    %v549 = vadd.f32 %v350, %v548
    %v550 = vpop.f32.mrb[0].mxu0
    %v551 = vadd.f32 %v354, %v550
    %552 = vmatprep.mubr.bf16.mxu0 0
    %553 = vmatmul.mubr.bf16.gmra.mrb[0].mxu0 %v308
    %v554 = vpop.f32.mrb[0].mxu0
    %v555 = vadd.f32 %v350, %v554
    %v556 = vpop.f32.mrb[0].mxu0
    %v557 = vadd.f32 %v354, %v556
    %v558 = vpop.f32.mrb[0].mxu0
    %v559 = vadd.f32 %v350, %v558
    %v560 = vpop.f32.mrb[0].mxu0
    %v561 = vadd.f32 %v354, %v560
    %562 = vmatprep.mubr.bf16.mxu0 0
    %563 = vmatmul.mubr.bf16.gmra.mrb[0].mxu0 %v309
    %v564 = vpop.f32.mrb[0].mxu0
    %v565 = vadd.f32 %v350, %v564
    %v566 = vpop.f32.mrb[0].mxu0
    %v567 = vadd.f32 %v354, %v566
    %v568 = vpop.f32.mrb[0].mxu0
    %v569 = vadd.f32 %v350, %v568
    %v570 = vpop.f32.mrb[0].mxu0
    %v571 = vadd.f32 %v354, %v570
    %572 = vmatprep.mubr.bf16.mxu0 0
    %573 = vmatmul.mubr.bf16.gmra.mrb[0].mxu0 %v310
    %v574 = vpop.f32.mrb[0].mxu0
    %v575 = vadd.f32 %v350, %v574
    %v576 = vpop.f32.mrb[0].mxu0
    %v577 = vadd.f32 %v354, %v576
    %v578 = vpop.f32.mrb[0].mxu0
    %v579 = vadd.f32 %v350, %v578
    %v580 = vpop.f32.mrb[0].mxu0
    %v581 = vadd.f32 %v354, %v580
    %582 = vmatprep.mubr.bf16.mxu0 0
    %583 = vmatmul.mubr.bf16.gmra.mrb[0].mxu0 %v311
    %v584 = vpop.f32.mrb[0].mxu0
    %v585 = vadd.f32 %v350, %v584
    %v586 = vpop.f32.mrb[0].mxu0
    %v587 = vadd.f32 %v354, %v586
    %v588 = vpop.f32.mrb[0].mxu0
    %v589 = vadd.f32 %v350, %v588
    %v590 = vpop.f32.mrb[0].mxu0
    %v591 = vadd.f32 %v354, %v590
    %592 = vmatprep.mubr.bf16.mxu0 0
    %593 = vmatmul.mubr.bf16.gmra.mrb[0].mxu0 %v312
    %v594 = vpop.f32.mrb[0].mxu0
    %v595 = vadd.f32 %v350, %v594
    %v596 = vpop.f32.mrb[0].mxu0
    %v597 = vadd.f32 %v354, %v596
    %v598 = vpop.f32.mrb[0].mxu0
    %v599 = vadd.f32 %v350, %v598
    %v600 = vpop.f32.mrb[0].mxu0
    %v601 = vadd.f32 %v354, %v600
    %602 = vdwg.mxu0
    %603 = vmatprep.subr.bf16.mxu0 0
    %604 = vmatpush1.bf16.msra.mxu0 %v444
    %605 = vmatprep.subr.bf16.mxu0 0
    %606 = vmatpush1.bf16.msra.mxu0 %v447
    %607 = vmatprep.subr.bf16.mxu0 0
    %608 = vmatpush1.bf16.msra.mxu0 %v450
    %609 = vmatprep.subr.bf16.mxu0 0
    %610 = vmatpush1.bf16.msra.mxu0 %v453
    %611 = vmatprep.subr.bf16.mxu0 0
    %612 = vmatpush1.bf16.msra.mxu0 %v456
    %613 = vmatprep.subr.bf16.mxu0 0
    %614 = vmatpush1.bf16.msra.mxu0 %v459
    %615 = vmatprep.subr.bf16.mxu0 0
    %616 = vmatpush1.bf16.msra.mxu0 %v462
    %617 = vmatprep.subr.bf16.mxu0 0
    %618 = vmatpush1.bf16.msra.mxu0 %v465
    %619 = vmatprep.subr.bf16.mxu0 0
    %620 = vmatpush1.bf16.msra.mxu0 0
    %621 = vmatprep.subr.bf16.mxu0 0
    %622 = vmatpush1.bf16.msra.mxu0 0
    %623 = vmatprep.subr.bf16.mxu0 0
    %624 = vmatpush1.bf16.msra.mxu0 0
    %625 = vmatprep.subr.bf16.mxu0 0
    %626 = vmatpush1.bf16.msra.mxu0 0
    %627 = vmatprep.subr.bf16.mxu0 0
    %628 = vmatpush1.bf16.msra.mxu0 0
    %629 = vmatprep.subr.bf16.mxu0 0
    %630 = vmatpush1.bf16.msra.mxu0 0
    %631 = vmatprep.subr.bf16.mxu0 0
    %632 = vmatpush1.bf16.msra.mxu0 0
    %633 = vmatprep.subr.bf16.mxu0 0
    %634 = vmatpush1.bf16.msra.mxu0 0
    %635 = vmatprep.mubr.bf16.mxu0 0
    %636 = vmatmul.mubr.bf16.gmra.mrb[0].mxu0 %v305
    %v637 = vpop.f32.mrb[0].mxu0
    %v638 = vadd.f32 %v358, %v637
    %v639 = vpop.f32.mrb[0].mxu0
    %v640 = vpop.f32.mrb[0].mxu0
    %v641 = vadd.f32 %v358, %v640
    %v642 = vpop.f32.mrb[0].mxu0
    %643 = vmatprep.mubr.bf16.mxu0 0
    %644 = vmatmul.mubr.bf16.gmra.mrb[0].mxu0 %v306
    %v645 = vpop.f32.mrb[0].mxu0
    %v646 = vadd.f32 %v358, %v645
    %v647 = vpop.f32.mrb[0].mxu0
    %v648 = vpop.f32.mrb[0].mxu0
    %v649 = vadd.f32 %v358, %v648
    %v650 = vpop.f32.mrb[0].mxu0
    %651 = vmatprep.mubr.bf16.mxu0 0
    %652 = vmatmul.mubr.bf16.gmra.mrb[0].mxu0 %v307
    %v653 = vpop.f32.mrb[0].mxu0
    %v654 = vadd.f32 %v358, %v653
    %v655 = vpop.f32.mrb[0].mxu0
    %v656 = vpop.f32.mrb[0].mxu0
    %v657 = vadd.f32 %v358, %v656
    %v658 = vpop.f32.mrb[0].mxu0
    %659 = vmatprep.mubr.bf16.mxu0 0
    %660 = vmatmul.mubr.bf16.gmra.mrb[0].mxu0 %v308
    %v661 = vpop.f32.mrb[0].mxu0
    %v662 = vadd.f32 %v358, %v661
    %v663 = vpop.f32.mrb[0].mxu0
    %v664 = vpop.f32.mrb[0].mxu0
    %v665 = vadd.f32 %v358, %v664
    %v666 = vpop.f32.mrb[0].mxu0
    %667 = vmatprep.mubr.bf16.mxu0 0
    %668 = vmatmul.mubr.bf16.gmra.mrb[0].mxu0 %v309
    %v669 = vpop.f32.mrb[0].mxu0
    %v670 = vadd.f32 %v358, %v669
    %v671 = vpop.f32.mrb[0].mxu0
    %v672 = vpop.f32.mrb[0].mxu0
    %v673 = vadd.f32 %v358, %v672
    %v674 = vpop.f32.mrb[0].mxu0
    %675 = vmatprep.mubr.bf16.mxu0 0
    %676 = vmatmul.mubr.bf16.gmra.mrb[0].mxu0 %v310
    %v677 = vpop.f32.mrb[0].mxu0
    %v678 = vadd.f32 %v358, %v677
    %v679 = vpop.f32.mrb[0].mxu0
    %v680 = vpop.f32.mrb[0].mxu0
    %v681 = vadd.f32 %v358, %v680
    %v682 = vpop.f32.mrb[0].mxu0
    %683 = vmatprep.mubr.bf16.mxu0 0
    %684 = vmatmul.mubr.bf16.gmra.mrb[0].mxu0 %v311
    %v685 = vpop.f32.mrb[0].mxu0
    %v686 = vadd.f32 %v358, %v685
    %v687 = vpop.f32.mrb[0].mxu0
    %v688 = vpop.f32.mrb[0].mxu0
    %v689 = vadd.f32 %v358, %v688
    %v690 = vpop.f32.mrb[0].mxu0
    %691 = vmatprep.mubr.bf16.mxu0 0
    %692 = vmatmul.mubr.bf16.gmra.mrb[0].mxu0 %v312
    %v693 = vpop.f32.mrb[0].mxu0
    %v694 = vadd.f32 %v358, %v693
    %v695 = vpop.f32.mrb[0].mxu0
    %v696 = vpop.f32.mrb[0].mxu0
    %v697 = vadd.f32 %v358, %v696
    %v698 = vpop.f32.mrb[0].mxu0
    %699 = vdwg.mxu0
    %v700 = vpack.c.bf16 %v529, %v525
    %v701 = vpack.c.bf16 %v531, %v527
    %v702 = vpack.c.bf16 %v641, %v638
    %v703 = vpack.c.bf16 %v539, %v535
    %v704 = vpack.c.bf16 %v541, %v537
    %v705 = vpack.c.bf16 %v649, %v646
    %v706 = vpack.c.bf16 %v549, %v545
    %v707 = vpack.c.bf16 %v551, %v547
    %v708 = vpack.c.bf16 %v657, %v654
    %v709 = vpack.c.bf16 %v559, %v555
    %v710 = vpack.c.bf16 %v561, %v557
    %v711 = vpack.c.bf16 %v665, %v662
    %v712 = vpack.c.bf16 %v569, %v565
    %v713 = vpack.c.bf16 %v571, %v567
    %v714 = vpack.c.bf16 %v673, %v670
    %v715 = vpack.c.bf16 %v579, %v575
    %v716 = vpack.c.bf16 %v581, %v577
    %v717 = vpack.c.bf16 %v681, %v678
    %v718 = vpack.c.bf16 %v589, %v585
    %v719 = vpack.c.bf16 %v591, %v587
    %v720 = vpack.c.bf16 %v689, %v686
    %v721 = vpack.c.bf16 %v599, %v595
    %v722 = vpack.c.bf16 %v601, %v597
    %v723 = vpack.c.bf16 %v697, %v694
    %v748 = vunpack.c.l.b16 %v700
    %v749 = vunpack.c.l.b16 %v701
    %v750 = vunpack.c.l.b16 %v702
    %v751 = vunpack.c.h.b16 %v700
    %v752 = vunpack.c.h.b16 %v701
    %v753 = vunpack.c.h.b16 %v702
    %v754 = vunpack.c.l.b16 %v703
    %v755 = vunpack.c.l.b16 %v704
    %v756 = vunpack.c.l.b16 %v705
    %v757 = vunpack.c.h.b16 %v703
    %v758 = vunpack.c.h.b16 %v704
    %v759 = vunpack.c.h.b16 %v705
    %v760 = vunpack.c.l.b16 %v706
    %v761 = vunpack.c.l.b16 %v707
    %v762 = vunpack.c.l.b16 %v708
    %v763 = vunpack.c.h.b16 %v706
    %v764 = vunpack.c.h.b16 %v707
    %v765 = vunpack.c.h.b16 %v708
    %v766 = vunpack.c.l.b16 %v709
    %v767 = vunpack.c.l.b16 %v710
    %v768 = vunpack.c.l.b16 %v711
    %v769 = vunpack.c.h.b16 %v709
    %v770 = vunpack.c.h.b16 %v710
    %v771 = vunpack.c.h.b16 %v711
    %v772 = vunpack.c.l.b16 %v712
    %v773 = vunpack.c.l.b16 %v713
    %v774 = vunpack.c.l.b16 %v714
    %v775 = vunpack.c.h.b16 %v712
    %v776 = vunpack.c.h.b16 %v713
    %v777 = vunpack.c.h.b16 %v714
    %v778 = vunpack.c.l.b16 %v715
    %v779 = vunpack.c.l.b16 %v716
    %v780 = vunpack.c.l.b16 %v717
    %v781 = vunpack.c.h.b16 %v715
    %v782 = vunpack.c.h.b16 %v716
    %v783 = vunpack.c.h.b16 %v717
    %v784 = vunpack.c.l.b16 %v718
    %v785 = vunpack.c.l.b16 %v719
    %v786 = vunpack.c.l.b16 %v720
    %v787 = vunpack.c.h.b16 %v718
    %v788 = vunpack.c.h.b16 %v719
    %v789 = vunpack.c.h.b16 %v720
    %v790 = vunpack.c.l.b16 %v721
    %v791 = vunpack.c.l.b16 %v722
    %v792 = vunpack.c.l.b16 %v723
    %v793 = vunpack.c.h.b16 %v721
    %v794 = vunpack.c.h.b16 %v722
    %v795 = vunpack.c.h.b16 %v723
    %v796 = vpack.c.b16 %v749, %v748
    %v797 = vpack.c.b16 %v750, %v750
    %v798 = vpack.c.b16 %v752, %v751
    %v799 = vpack.c.b16 %v753, %v753
    %v800 = vpack.c.b16 %v755, %v754
    %v801 = vpack.c.b16 %v756, %v756
    %v802 = vpack.c.b16 %v758, %v757
    %v803 = vpack.c.b16 %v759, %v759
    %v804 = vpack.c.b16 %v761, %v760
    %v805 = vpack.c.b16 %v762, %v762
    %v806 = vpack.c.b16 %v764, %v763
    %v807 = vpack.c.b16 %v765, %v765
    %v808 = vpack.c.b16 %v767, %v766
    %v809 = vpack.c.b16 %v768, %v768
    %v810 = vpack.c.b16 %v770, %v769
    %v811 = vpack.c.b16 %v771, %v771
    %v812 = vpack.c.b16 %v773, %v772
    %v813 = vpack.c.b16 %v774, %v774
    %v814 = vpack.c.b16 %v776, %v775
    %v815 = vpack.c.b16 %v777, %v777
    %v816 = vpack.c.b16 %v779, %v778
    %v817 = vpack.c.b16 %v780, %v780
    %v818 = vpack.c.b16 %v782, %v781
    %v819 = vpack.c.b16 %v783, %v783
    %v820 = vpack.c.b16 %v785, %v784
    %v821 = vpack.c.b16 %v786, %v786
    %v822 = vpack.c.b16 %v788, %v787
    %v823 = vpack.c.b16 %v789, %v789
    %v824 = vpack.c.b16 %v791, %v790
    %v825 = vpack.c.b16 %v792, %v792
    %v826 = vpack.c.b16 %v794, %v793
    %v827 = vpack.c.b16 %v795, %v795
    %860 = vst [vmem:[#allocation9] sm:$0xff] %v796
    %861 = vst [vmem:[#allocation9 + $0x8] sm:$0xf] %v797
    %862 = vst [vmem:[#allocation9 + $0xc] sm:$0xff] %v798
    %863 = vst [vmem:[#allocation9 + $0x14] sm:$0xf] %v799
    %864 = vst [vmem:[#allocation9 + $0x18] sm:$0xff] %v800
    %865 = vst [vmem:[#allocation9 + $0x20] sm:$0xf] %v801
    %866 = vst [vmem:[#allocation9 + $0x24] sm:$0xff] %v802
    %867 = vst [vmem:[#allocation9 + $0x2c] sm:$0xf] %v803
    %868 = vst [vmem:[#allocation9 + $0x30] sm:$0xff] %v804
    %869 = vst [vmem:[#allocation9 + $0x38] sm:$0xf] %v805
    %870 = vst [vmem:[#allocation9 + $0x3c] sm:$0xff] %v806
    %871 = vst [vmem:[#allocation9 + $0x44] sm:$0xf] %v807
    %872 = vst [vmem:[#allocation9 + $0x48] sm:$0xff] %v808
    %873 = vst [vmem:[#allocation9 + $0x50] sm:$0xf] %v809
    %874 = vst [vmem:[#allocation9 + $0x54] sm:$0xff] %v810
    %875 = vst [vmem:[#allocation9 + $0x5c] sm:$0xf] %v811
    %876 = vst [vmem:[#allocation9 + $0x60] sm:$0xff] %v812
    %877 = vst [vmem:[#allocation9 + $0x68] sm:$0xf] %v813
    %878 = vst [vmem:[#allocation9 + $0x6c] sm:$0xff] %v814
    %879 = vst [vmem:[#allocation9 + $0x74] sm:$0xf] %v815
    %880 = vst [vmem:[#allocation9 + $0x78] sm:$0xff] %v816
    %881 = vst [vmem:[#allocation9 + $0x80] sm:$0xf] %v817
    %882 = vst [vmem:[#allocation9 + $0x84] sm:$0xff] %v818
    %883 = vst [vmem:[#allocation9 + $0x8c] sm:$0xf] %v819
    %884 = vst [vmem:[#allocation9 + $0x90] sm:$0xff] %v820
    %885 = vst [vmem:[#allocation9 + $0x98] sm:$0xf] %v821
    %886 = vst [vmem:[#allocation9 + $0x9c] sm:$0xff] %v822
    %887 = vst [vmem:[#allocation9 + $0xa4] sm:$0xf] %v823
    %888 = vst [vmem:[#allocation9 + $0xa8] sm:$0xff] %v824
    %889 = vst [vmem:[#allocation9 + $0xb0] sm:$0xf] %v825
    %890 = vst [vmem:[#allocation9 + $0xb4] sm:$0xff] %v826
    %891 = vst [vmem:[#allocation9 + $0xbc] sm:$0xf] %v827
    // Predicated region
    $region34: #{tpu_custom_call.1} parent=1 // pred_check
      _
    $region35: #{tpu_custom_call.1} parent=1 // pred_check_branch
      %893 = sbr.rel (0) target = $region37
    $region36: #{tpu_custom_call.1} parent=1 // pred_region
      %s895 = ssub.s32 3072, 3072
      %896 = vsyncadd [#allocation5], %s895
      %s897 = sshll.u32 [#allocation9], 4
      %s898 = int_to_ptr.vmem [resolvable:$true] %s897
      %903 = dma.vmem_to_hbm [thread:$0]  %s898, 3072, %s5, [#allocation5], 192, 192, 12
    $region37: #{tpu_custom_call.1} parent=1 // pred_fallthru
      _
    // Predicated region
    $region38: #{tpu_custom_call.1} parent=1 // pred_check
      _
    $region39: #{tpu_custom_call.1} parent=1 // pred_check_branch
      %905 = sbr.rel (0) target = $region41
    $region40: #{tpu_custom_call.1} parent=1 // pred_region
      %906 = dma.done [#allocation5], 3072
    $region41: #{tpu_custom_call.1} parent=1 // pred_fallthru
      _
    %907 = vsyncpa [#allocation4], 1
    %908 = vsyncpa [#allocation7], 1
    %909 = vsyncpa [#allocation5], 1

</llo_original>
